<compile_context>
chip_gen: v7x
topology: tpu7x:2x2x1
jax: 0.10.0
libtpu: 0.0.40
codegen_flags: <defaults>
</compile_context>

<pallas_src>
import jax
import jax.numpy as jnp
from jax.experimental import pallas as pl
from jax.experimental.pallas import tpu as pltpu


def mlp_kernel(x_ref, w1_ref, b1_ref, w2_ref, b2_ref, w3_ref, b3_ref,
               w4_ref, b4_ref, o_ref):
    """Fused 4-layer MLP forward for one batch tile (bf16 MXU, f32 accumulate)."""
    cdt = w1_ref.dtype                      # bf16 streaming dtype for the MXU

    h = x_ref[...].astype(cdt)              # f32 -> bf16 cast on the VPU (cheap)

    h = jnp.dot(h, w1_ref[...], preferred_element_type=jnp.float32) + b1_ref[...]
    h = jnp.maximum(h, 0.0).astype(cdt)     # ReLU in f32 (Dropout = identity, eval)

    h = jnp.dot(h, w2_ref[...], preferred_element_type=jnp.float32) + b2_ref[...]
    h = jnp.maximum(h, 0.0).astype(cdt)     # ReLU in f32 (Dropout = identity, eval)

    h = jnp.dot(h, w3_ref[...], preferred_element_type=jnp.float32) + b3_ref[...]
    h = jnp.maximum(h, 0.0)                 # keep f32; layer 4 runs off the MXU

    # Layer 4: an N=1 matmul would burn ~tile_m/8 vmatmuls to fill one output
    # lane.  Do it as VPU multiply + XLU lane reduce instead (w4 is (1, 32) f32).
    out = jnp.sum(h * w4_ref[...], axis=-1, keepdims=True) + b4_ref[...]
    o_ref[...] = out.astype(o_ref.dtype)


def _round_up(n, m):
    return ((n + m - 1) // m) * m


def prepare_params(params, compute_dtype=jnp.bfloat16):
    """One-time cast / layout of the parameters (call once, outside the hot path).

    w1..w3 -> bf16 (MXU operands), biases -> f32, w4 -> (1, 32) f32 row for the
    VPU/XLU layer-4 path.
    """
    return (
        params["w1"].astype(compute_dtype), params["b1"].astype(jnp.float32),
        params["w2"].astype(compute_dtype), params["b2"].astype(jnp.float32),
        params["w3"].astype(compute_dtype), params["b3"].astype(jnp.float32),
        params["w4"].astype(jnp.float32).reshape(1, -1),   # (32,1) -> (1,32)
        params["b4"].astype(jnp.float32),
    )


def flight_price_nn_forward(x, prepared, *, tile_m=2048,
                            vmem_limit_bytes=32 * 1024 * 1024):
    """x: [B, input_size] float32.  prepared: output of prepare_params().

    tile_m is the main perf knob (1024-4096 recommended for large batches).
    """
    B, F = x.shape

    # Batch tile selection:
    #  - never allocate a tile much larger than the batch (round B up to the
    #    8-row sublane granule),
    #  - keep >= 2 grid steps when the batch allows it so v7x's 2 TensorCores
    #    both get work on the "parallel" axis,
    #  - keep the tile a multiple of 8 (sublane alignment of the BlockSpec).
    tile = min(tile_m, _round_up(B, 8))
    if B >= 256:
        tile = min(tile, _round_up((B + 1) // 2, 128))
    tile = _round_up(max(tile, 8), 8)
    num_tiles = pl.cdiv(B, tile)

    # Whole ~25 KB parameter set lives in VMEM for the duration of the grid
    # (no blocking, no per-step DMA, no double-buffering).
    resident = pl.BlockSpec(memory_space=pltpu.MemorySpace.VMEM)

    out = pl.pallas_call(
        mlp_kernel,
        out_shape=jax.ShapeDtypeStruct((B, 1), jnp.float32),
        grid=(num_tiles,),
        in_specs=[pl.BlockSpec((tile, F), lambda i: (i, 0))] + [resident] * 8,
        out_specs=pl.BlockSpec((tile, 1), lambda i: (i, 0)),
        compiler_params=pltpu.CompilerParams(
            dimension_semantics=("parallel",),
            vmem_limit_bytes=vmem_limit_bytes),
    )(x, *prepared)

    return out


def init_params(key, input_size):
    """Deterministic init matching the nn.Linear shapes of FlightPriceNN.

    Weights stored as [in_features, out_features] (transpose of PyTorch's
    [out, in]) so the kernel does plain x @ W + b.
    """
    dims = [(input_size, 128), (128, 64), (64, 32), (32, 1)]
    params = {}
    keys = jax.random.split(key, len(dims) * 2)
    for idx, (fan_in, fan_out) in enumerate(dims):
        bound = 1.0 / jnp.sqrt(jnp.float32(fan_in))
        w = jax.random.uniform(keys[2 * idx], (fan_in, fan_out),
                               jnp.float32, -bound, bound)
        b = jax.random.uniform(keys[2 * idx + 1], (1, fan_out),
                               jnp.float32, -bound, bound)
        params[f"w{idx + 1}"] = w
        params[f"b{idx + 1}"] = b
    return params


def reference_forward_bf16(x, params):
    """Pure-JAX reference mirroring the kernel's bf16-stream / f32-accumulate numerics."""
    dt = jnp.bfloat16

    def layer(h, w, b):
        return jnp.dot(h.astype(dt), w.astype(dt),
                       preferred_element_type=jnp.float32) + b

    h = jnp.maximum(layer(x, params["w1"], params["b1"]), 0.0)
    h = jnp.maximum(layer(h, params["w2"], params["b2"]), 0.0)
    h = jnp.maximum(layer(h, params["w3"], params["b3"]), 0.0)
    return jnp.dot(h, params["w4"],
                   preferred_element_type=jnp.float32) + params["b4"]


def reference_forward_f32(x, params):
    """Pure float32 reference (true FlightPriceNN eval-mode numerics)."""
    def layer(h, w, b):
        return jnp.dot(h, w, preferred_element_type=jnp.float32) + b

    h = jnp.maximum(layer(x, params["w1"], params["b1"]), 0.0)
    h = jnp.maximum(layer(h, params["w2"], params["b2"]), 0.0)
    h = jnp.maximum(layer(h, params["w3"], params["b3"]), 0.0)
    return layer(h, params["w4"], params["b4"])


if __name__ == "__main__":
    key = jax.random.PRNGKey(0)
    k_x, k_p = jax.random.split(key)

    input_size = 16
    params = init_params(k_p, input_size)
    prepared = prepare_params(params)   # cast/lay out weights once

    # Small batch: exact-fit single tile of 8 rows.
    batch = 8
    x = jax.random.normal(k_x, (batch, input_size), jnp.float32)
    out = jax.block_until_ready(flight_price_nn_forward(x, prepared))
    assert out.shape == (batch, 1)
    assert jnp.allclose(out, reference_forward_bf16(x, params),
                        atol=5e-3, rtol=5e-3), "mismatch vs bf16 reference"
    assert jnp.allclose(out, reference_forward_f32(x, params),
                        atol=5e-2, rtol=5e-2), "drift vs f32 reference"

    # Ragged / multi-tile batch: 300 rows -> 2 grid steps of 256 rows, the
    # second block is a partial (masked) last block -- no jnp.pad copy of x.
    batch2 = 300
    x2 = jax.random.normal(k_x, (batch2, input_size), jnp.float32)
    out2 = jax.block_until_ready(flight_price_nn_forward(x2, prepared))
    assert out2.shape == (batch2, 1)
    assert jnp.allclose(out2, reference_forward_bf16(x2, params),
                        atol=5e-3, rtol=5e-3), "mismatch vs bf16 reference (ragged)"
    assert jnp.allclose(out2, reference_forward_f32(x2, params),
                        atol=5e-2, rtol=5e-2), "drift vs f32 reference (ragged)"

    print("KERNEL_OK")
</pallas_src>

<mosaic_0001>
module attributes {stable_mosaic.version = 11 : i64} {
  func.func @mlp_kernel(%arg0: i32, %arg1: memref<8x16xf32, #tpu.memory_space<vmem>>, %arg2: memref<16x128xbf16, #tpu.memory_space<vmem>>, %arg3: memref<1x128xf32, #tpu.memory_space<vmem>>, %arg4: memref<128x64xbf16, #tpu.memory_space<vmem>>, %arg5: memref<1x64xf32, #tpu.memory_space<vmem>>, %arg6: memref<64x32xbf16, #tpu.memory_space<vmem>>, %arg7: memref<1x32xf32, #tpu.memory_space<vmem>>, %arg8: memref<1x32xf32, #tpu.memory_space<vmem>>, %arg9: memref<1x1xf32, #tpu.memory_space<vmem>>, %arg10: memref<8x1xf32, #tpu.memory_space<vmem>>) attributes {dimension_semantics = [#tpu.dimension_semantics<parallel>], iteration_bounds = array<i64: 1>, scalar_prefetch = 0 : i64, scratch_operands = 0 : i64, tpu.core_type = #tpu.core_type<tc>, window_params = [{transform_indices = @transform_0, window_bounds = array<i64: 8, 16>}, {pipeline_mode = #tpu.pipeline_mode<synchronous>, transform_indices = @transform_1, window_bounds = array<i64: 16, 128>}, {pipeline_mode = #tpu.pipeline_mode<synchronous>, transform_indices = @transform_2, window_bounds = array<i64: 1, 128>}, {pipeline_mode = #tpu.pipeline_mode<synchronous>, transform_indices = @transform_3, window_bounds = array<i64: 128, 64>}, {pipeline_mode = #tpu.pipeline_mode<synchronous>, transform_indices = @transform_4, window_bounds = array<i64: 1, 64>}, {pipeline_mode = #tpu.pipeline_mode<synchronous>, transform_indices = @transform_5, window_bounds = array<i64: 64, 32>}, {pipeline_mode = #tpu.pipeline_mode<synchronous>, transform_indices = @transform_6, window_bounds = array<i64: 1, 32>}, {pipeline_mode = #tpu.pipeline_mode<synchronous>, transform_indices = @transform_7, window_bounds = array<i64: 1, 32>}, {pipeline_mode = #tpu.pipeline_mode<synchronous>, transform_indices = @transform_8, window_bounds = array<i64: 1, 1>}, {transform_indices = @transform_9, window_bounds = array<i64: 8, 1>}]} {
    %c0 = arith.constant 0 : index
    %c0_0 = arith.constant 0 : index
    %0 = vector.load %arg1[%c0, %c0_0] : memref<8x16xf32, #tpu.memory_space<vmem>>, vector<8x16xf32>
    %1 = arith.truncf %0 : vector<8x16xf32> to vector<8x16xbf16>
    %c0_1 = arith.constant 0 : index
    %c0_2 = arith.constant 0 : index
    %2 = vector.load %arg2[%c0_1, %c0_2] : memref<16x128xbf16, #tpu.memory_space<vmem>>, vector<16x128xbf16>
    %cst = arith.constant dense<0.000000e+00> : vector<8x128xf32>
    %3 = tpu.matmul %1, %2, %cst {dimension_numbers = #tpu.dot_dimension_numbers<[1], [0], [0], [1], [0, 0, 1, 1], [], []>} : vector<8x16xbf16>, vector<16x128xbf16>, vector<8x128xf32> -> vector<8x128xf32>
    %c0_3 = arith.constant 0 : index
    %c0_4 = arith.constant 0 : index
    %4 = vector.load %arg3[%c0_3, %c0_4] : memref<1x128xf32, #tpu.memory_space<vmem>>, vector<1x128xf32>
    %5 = vector.broadcast %4 : vector<1x128xf32> to vector<8x128xf32>
    %6 = arith.addf %3, %5 : vector<8x128xf32>
    %cst_5 = arith.constant 0.000000e+00 : f32
    %7 = vector.broadcast %cst_5 : f32 to vector<8x128xf32>
    %8 = arith.maximumf %6, %7 : vector<8x128xf32>
    %9 = arith.truncf %8 : vector<8x128xf32> to vector<8x128xbf16>
    %c0_6 = arith.constant 0 : index
    %c0_7 = arith.constant 0 : index
    %10 = vector.load %arg4[%c0_6, %c0_7] : memref<128x64xbf16, #tpu.memory_space<vmem>>, vector<128x64xbf16>
    %cst_8 = arith.constant dense<0.000000e+00> : vector<8x64xf32>
    %11 = tpu.matmul %9, %10, %cst_8 {dimension_numbers = #tpu.dot_dimension_numbers<[1], [0], [0], [1], [0, 0, 1, 1], [], []>} : vector<8x128xbf16>, vector<128x64xbf16>, vector<8x64xf32> -> vector<8x64xf32>
    %c0_9 = arith.constant 0 : index
    %c0_10 = arith.constant 0 : index
    %12 = vector.load %arg5[%c0_9, %c0_10] : memref<1x64xf32, #tpu.memory_space<vmem>>, vector<1x64xf32>
    %13 = vector.broadcast %12 : vector<1x64xf32> to vector<8x64xf32>
    %14 = arith.addf %11, %13 : vector<8x64xf32>
    %cst_11 = arith.constant 0.000000e+00 : f32
    %15 = vector.broadcast %cst_11 : f32 to vector<8x64xf32>
    %16 = arith.maximumf %14, %15 : vector<8x64xf32>
    %17 = arith.truncf %16 : vector<8x64xf32> to vector<8x64xbf16>
    %c0_12 = arith.constant 0 : index
    %c0_13 = arith.constant 0 : index
    %18 = vector.load %arg6[%c0_12, %c0_13] : memref<64x32xbf16, #tpu.memory_space<vmem>>, vector<64x32xbf16>
    %cst_14 = arith.constant dense<0.000000e+00> : vector<8x32xf32>
    %19 = tpu.matmul %17, %18, %cst_14 {dimension_numbers = #tpu.dot_dimension_numbers<[1], [0], [0], [1], [0, 0, 1, 1], [], []>} : vector<8x64xbf16>, vector<64x32xbf16>, vector<8x32xf32> -> vector<8x32xf32>
    %c0_15 = arith.constant 0 : index
    %c0_16 = arith.constant 0 : index
    %20 = vector.load %arg7[%c0_15, %c0_16] : memref<1x32xf32, #tpu.memory_space<vmem>>, vector<1x32xf32>
    %21 = vector.broadcast %20 : vector<1x32xf32> to vector<8x32xf32>
    %22 = arith.addf %19, %21 : vector<8x32xf32>
    %cst_17 = arith.constant 0.000000e+00 : f32
    %23 = vector.broadcast %cst_17 : f32 to vector<8x32xf32>
    %24 = arith.maximumf %22, %23 : vector<8x32xf32>
    %c0_18 = arith.constant 0 : index
    %c0_19 = arith.constant 0 : index
    %25 = vector.load %arg8[%c0_18, %c0_19] : memref<1x32xf32, #tpu.memory_space<vmem>>, vector<1x32xf32>
    %26 = vector.broadcast %25 : vector<1x32xf32> to vector<8x32xf32>
    %27 = arith.mulf %24, %26 : vector<8x32xf32>
    %cst_20 = arith.constant dense<0.000000e+00> : vector<8xf32>
    %28 = vector.multi_reduction <add>, %27, %cst_20 [1] : vector<8x32xf32> to vector<8xf32>
    %29 = vector.shape_cast %28 : vector<8xf32> to vector<8x1xf32>
    %c0_21 = arith.constant 0 : index
    %c0_22 = arith.constant 0 : index
    %30 = vector.load %arg9[%c0_21, %c0_22] : memref<1x1xf32, #tpu.memory_space<vmem>>, vector<1x1xf32>
    %31 = vector.broadcast %30 : vector<1x1xf32> to vector<8x1xf32>
    %32 = arith.addf %29, %31 : vector<8x1xf32>
    %c0_23 = arith.constant 0 : index
    %c0_24 = arith.constant 0 : index
    %33 = vector.load %arg10[%c0_23, %c0_24] : memref<8x1xf32, #tpu.memory_space<vmem>>, vector<8x1xf32>
    tpu.vector_store %arg10[%c0_23, %c0_24], %32 {strides = array<i32>} : memref<8x1xf32, #tpu.memory_space<vmem>>, vector<8x1xf32>,
    return
  }
  func.func @transform_0(%arg0: i32) -> (i32, i32) {
    %c0_i32 = arith.constant 0 : i32
    %c0_i32_0 = arith.constant 0 : i32
    return %arg0, %c0_i32 : i32, i32
  }
  func.func @transform_1(%arg0: i32) -> (i32, i32) {
    %c0_i32 = arith.constant 0 : i32
    %c0_i32_0 = arith.constant 0 : i32
    %c0_i32_1 = arith.constant 0 : i32
    return %c0_i32, %c0_i32_0 : i32, i32
  }
  func.func @transform_2(%arg0: i32) -> (i32, i32) {
    %c0_i32 = arith.constant 0 : i32
    %c0_i32_0 = arith.constant 0 : i32
    %c0_i32_1 = arith.constant 0 : i32
    return %c0_i32, %c0_i32_0 : i32, i32
  }
  func.func @transform_3(%arg0: i32) -> (i32, i32) {
    %c0_i32 = arith.constant 0 : i32
    %c0_i32_0 = arith.constant 0 : i32
    %c0_i32_1 = arith.constant 0 : i32
    return %c0_i32, %c0_i32_0 : i32, i32
  }
  func.func @transform_4(%arg0: i32) -> (i32, i32) {
    %c0_i32 = arith.constant 0 : i32
    %c0_i32_0 = arith.constant 0 : i32
    %c0_i32_1 = arith.constant 0 : i32
    return %c0_i32, %c0_i32_0 : i32, i32
  }
  func.func @transform_5(%arg0: i32) -> (i32, i32) {
    %c0_i32 = arith.constant 0 : i32
    %c0_i32_0 = arith.constant 0 : i32
    %c0_i32_1 = arith.constant 0 : i32
    return %c0_i32, %c0_i32_0 : i32, i32
  }
  func.func @transform_6(%arg0: i32) -> (i32, i32) {
    %c0_i32 = arith.constant 0 : i32
    %c0_i32_0 = arith.constant 0 : i32
    %c0_i32_1 = arith.constant 0 : i32
    return %c0_i32, %c0_i32_0 : i32, i32
  }
  func.func @transform_7(%arg0: i32) -> (i32, i32) {
    %c0_i32 = arith.constant 0 : i32
    %c0_i32_0 = arith.constant 0 : i32
    %c0_i32_1 = arith.constant 0 : i32
    return %c0_i32, %c0_i32_0 : i32, i32
  }
  func.func @transform_8(%arg0: i32) -> (i32, i32) {
    %c0_i32 = arith.constant 0 : i32
    %c0_i32_0 = arith.constant 0 : i32
    %c0_i32_1 = arith.constant 0 : i32
    return %c0_i32, %c0_i32_0 : i32, i32
  }
  func.func @transform_9(%arg0: i32) -> (i32, i32) {
    %c0_i32 = arith.constant 0 : i32
    %c0_i32_0 = arith.constant 0 : i32
    return %arg0, %c0_i32 : i32, i32
  }
}

</mosaic_0001>

<llo_original>
// kernel: tpu_custom_call.1
$region0: #{tpu_custom_call.1}
  #allocation0 [shape = 'u32[]', space=smem, size = 0x4, offset = 0x4, fixed_abs, tag = 'smem constant byte address 0x4 - core index']
  #allocation1 [shape = 'u32[144,128]{1,0:T(1,128)}', space=vmem, size = 0x12000, scoped, tag = 'internal scratch']
  #allocation2 [shape = 'f32[1,1]{1,0:T(1,128)S(1)}', space=vmem, size = 0x200, scoped, tag = 'scoped memory for tpu_custom_call.1']
  %s0 = inlined_call_operand.vmem [shape: f32[8,16], index: 0, kind: input, shape index: {}]
  %s1 = inlined_call_operand.vmem [shape: bf16[16,128], index: 1, kind: input, shape index: {}]
  %s2 = inlined_call_operand.vmem [shape: f32[1,128], index: 2, kind: input, shape index: {}]
  %s3 = inlined_call_operand.vmem [shape: bf16[128,64], index: 3, kind: input, shape index: {}]
  %s4 = inlined_call_operand.vmem [shape: f32[1,64], index: 4, kind: input, shape index: {}]
  %s5 = inlined_call_operand.vmem [shape: bf16[64,32], index: 5, kind: input, shape index: {}]
  %s6 = inlined_call_operand.vmem [shape: f32[1,32], index: 6, kind: input, shape index: {}]
  %s7 = inlined_call_operand.vmem [shape: f32[1,32], index: 7, kind: input, shape index: {}]
  %s8 = inlined_call_operand.<no memory space> [shape: f32[1,1], index: 8, kind: input, shape index: {}]
  %s9 = inlined_call_operand.vmem [shape: f32[8,1], index: 9, kind: output, shape index: {}]
  %s10 = sld [smem:[#allocation0]]
  $region46: #{tpu_custom_call.1} parent=0
    _
  %s12 = ssub.s32 1, %s10
  %s13 = scalar_select 0, %s12, %s10
  %v14 = vstv %s8
  %15 = vst [vmem:[#allocation2] sm:$0x1] %v14
  // Predicated region
  $region2: #{tpu_custom_call.1} parent=0 // pred_check
    _
  $region3: #{tpu_custom_call.1} parent=0 // pred_check_branch
    %17 = sbr.rel (0) target = $region5
  $region4: #{tpu_custom_call.1} parent=0 // pred_region
    _
  $region5: #{tpu_custom_call.1} parent=0 // pred_fallthru
    _
  // Predicated region
  $region6: #{tpu_custom_call.1} parent=0 // pred_check
    _
  $region7: #{tpu_custom_call.1} parent=0 // pred_check_branch
    %19 = sbr.rel (0) target = $region9
  $region8: #{tpu_custom_call.1} parent=0 // pred_region
    _
  $region9: #{tpu_custom_call.1} parent=0 // pred_fallthru
    _
  // Predicated region
  $region10: #{tpu_custom_call.1} parent=0 // pred_check
    _
  $region11: #{tpu_custom_call.1} parent=0 // pred_check_branch
    %21 = sbr.rel (0) target = $region13
  $region12: #{tpu_custom_call.1} parent=0 // pred_region
    _
  $region13: #{tpu_custom_call.1} parent=0 // pred_fallthru
    _
  // Predicated region
  $region14: #{tpu_custom_call.1} parent=0 // pred_check
    _
  $region15: #{tpu_custom_call.1} parent=0 // pred_check_branch
    %23 = sbr.rel (0) target = $region17
  $region16: #{tpu_custom_call.1} parent=0 // pred_region
    _
  $region17: #{tpu_custom_call.1} parent=0 // pred_fallthru
    _
  // Predicated region
  $region18: #{tpu_custom_call.1} parent=0 // pred_check
    _
  $region19: #{tpu_custom_call.1} parent=0 // pred_check_branch
    %25 = sbr.rel (0) target = $region21
  $region20: #{tpu_custom_call.1} parent=0 // pred_region
    _
  $region21: #{tpu_custom_call.1} parent=0 // pred_fallthru
    _
  // Predicated region
  $region22: #{tpu_custom_call.1} parent=0 // pred_check
    _
  $region23: #{tpu_custom_call.1} parent=0 // pred_check_branch
    %27 = sbr.rel (0) target = $region25
  $region24: #{tpu_custom_call.1} parent=0 // pred_region
    _
  $region25: #{tpu_custom_call.1} parent=0 // pred_fallthru
    _
  // Predicated region
  $region26: #{tpu_custom_call.1} parent=0 // pred_check
    _
  $region27: #{tpu_custom_call.1} parent=0 // pred_check_branch
    %29 = sbr.rel (0) target = $region29
  $region28: #{tpu_custom_call.1} parent=0 // pred_region
    _
  $region29: #{tpu_custom_call.1} parent=0 // pred_fallthru
    _
  // Predicated region
  $region30: #{tpu_custom_call.1} parent=0 // pred_check
    _
  $region31: #{tpu_custom_call.1} parent=0 // pred_check_branch
    %31 = sbr.rel (0) target = $region33
  $region32: #{tpu_custom_call.1} parent=0 // pred_region
    _
  $region33: #{tpu_custom_call.1} parent=0 // pred_fallthru
    _
  // Predicated region
  $region34: #{tpu_custom_call.1} parent=0 // pred_check
    _
  $region35: #{tpu_custom_call.1} parent=0 // pred_check_branch
    %33 = sbr.rel (0) target = $region37
  $region36: #{tpu_custom_call.1} parent=0 // pred_region
    _
  $region37: #{tpu_custom_call.1} parent=0 // pred_fallthru
    _
  %v35 = vld [vmem:[%s0] sm:$0xff]
  %v36 = vpack.c.bf16 %v35, %v35
  %v37 = vld [vmem:[%s1] sm:$0xf]
  %v38 = vld [vmem:[%s1 + $0x4] sm:$0xf]
  %v39 = vld [vmem:[%s2] sm:$0x1]
  %v41 = vlaneseq
  %v42 = vshrl.u32 %v41, 7
  %v43 = vsub.s32 0, %v42
  %v44 = vrot.slane %v39, %v43
  %v48 = vunpack.c.l.b16 %v37
  %v49 = vunpack.c.l.b16 %v38
  %v50 = vpack.c.b16 %v49, %v48
  %vm52 = vcmask 130048
  %v54 = vsel %vm52, %v36, 0
  %56 = vmatprep.subr.bf16.mxu0 0
  %57 = vmatpush1.bf16.msra.mxu0 %v50
  %58 = vmatprep.subr.bf16.mxu0 0
  %59 = vmatpush1.bf16.msra.mxu0 0
  %60 = vmatprep.subr.bf16.mxu0 0
  %61 = vmatpush1.bf16.msra.mxu0 0
  %62 = vmatprep.subr.bf16.mxu0 0
  %63 = vmatpush1.bf16.msra.mxu0 0
  %64 = vmatprep.subr.bf16.mxu0 0
  %65 = vmatpush1.bf16.msra.mxu0 0
  %66 = vmatprep.subr.bf16.mxu0 0
  %67 = vmatpush1.bf16.msra.mxu0 0
  %68 = vmatprep.subr.bf16.mxu0 0
  %69 = vmatpush1.bf16.msra.mxu0 0
  %70 = vmatprep.subr.bf16.mxu0 0
  %71 = vmatpush1.bf16.msra.mxu0 0
  %72 = vmatprep.subr.bf16.mxu0 0
  %73 = vmatpush1.bf16.msra.mxu0 0
  %74 = vmatprep.subr.bf16.mxu0 0
  %75 = vmatpush1.bf16.msra.mxu0 0
  %76 = vmatprep.subr.bf16.mxu0 0
  %77 = vmatpush1.bf16.msra.mxu0 0
  %78 = vmatprep.subr.bf16.mxu0 0
  %79 = vmatpush1.bf16.msra.mxu0 0
  %80 = vmatprep.subr.bf16.mxu0 0
  %81 = vmatpush1.bf16.msra.mxu0 0
  %82 = vmatprep.subr.bf16.mxu0 0
  %83 = vmatpush1.bf16.msra.mxu0 0
  %84 = vmatprep.subr.bf16.mxu0 0
  %85 = vmatpush1.bf16.msra.mxu0 0
  %86 = vmatprep.subr.bf16.mxu0 0
  %87 = vmatpush1.bf16.msra.mxu0 0
  %88 = vmatprep.mubr.bf16.mxu0 0
  %89 = vmatmul.mubr.bf16.gmra.mrb[0].mxu0 %v54
  %v90 = vpop.f32.mrb[0].mxu0
  %v91 = vadd.f32 %v44, %v90
  %v92 = vpop.f32.mrb[0].mxu0
  %v93 = vpop.f32.mrb[0].mxu0
  %v94 = vpop.f32.mrb[0].mxu0
  %95 = vdwg.mxu0
  %v96 = vmax.f32 %v91, 0.0
  %v97 = vpack.c.bf16 %v96, %v96
  %v98 = vld [vmem:[%s3] sm:$0xf]
  %v99 = vld [vmem:[%s3 + $0x4] sm:$0xf]
  %v100 = vld [vmem:[%s3 + $0x8] sm:$0xf]
  %v101 = vld [vmem:[%s3 + $0xc] sm:$0xf]
  %v102 = vld [vmem:[%s3 + $0x10] sm:$0xf]
  %v103 = vld [vmem:[%s3 + $0x14] sm:$0xf]
  %v104 = vld [vmem:[%s3 + $0x18] sm:$0xf]
  %v105 = vld [vmem:[%s3 + $0x1c] sm:$0xf]
  %v106 = vld [vmem:[%s3 + $0x20] sm:$0xf]
  %v107 = vld [vmem:[%s3 + $0x24] sm:$0xf]
  %v108 = vld [vmem:[%s3 + $0x28] sm:$0xf]
  %v109 = vld [vmem:[%s3 + $0x2c] sm:$0xf]
  %v110 = vld [vmem:[%s3 + $0x30] sm:$0xf]
  %v111 = vld [vmem:[%s3 + $0x34] sm:$0xf]
  %v112 = vld [vmem:[%s3 + $0x38] sm:$0xf]
  %v113 = vld [vmem:[%s3 + $0x3c] sm:$0xf]
  %v114 = vld [vmem:[%s4] sm:$0x1]
  %v116 = vlaneseq
  %v117 = vshrl.u32 %v116, 7
  %v118 = vsub.s32 0, %v117
  %v119 = vrot.slane %v114, %v118
  %v137 = vunpack.c.l.b16 %v98
  %v138 = vunpack.c.l.b16 %v99
  %v139 = vunpack.c.l.b16 %v100
  %v140 = vunpack.c.l.b16 %v101
  %v141 = vunpack.c.l.b16 %v102
  %v142 = vunpack.c.l.b16 %v103
  %v143 = vunpack.c.l.b16 %v104
  %v144 = vunpack.c.l.b16 %v105
  %v145 = vunpack.c.l.b16 %v106
  %v146 = vunpack.c.l.b16 %v107
  %v147 = vunpack.c.l.b16 %v108
  %v148 = vunpack.c.l.b16 %v109
  %v149 = vunpack.c.l.b16 %v110
  %v150 = vunpack.c.l.b16 %v111
  %v151 = vunpack.c.l.b16 %v112
  %v152 = vunpack.c.l.b16 %v113
  %v153 = vpack.c.b16 %v138, %v137
  %v154 = vpack.c.b16 %v140, %v139
  %v155 = vpack.c.b16 %v142, %v141
  %v156 = vpack.c.b16 %v144, %v143
  %v157 = vpack.c.b16 %v146, %v145
  %v158 = vpack.c.b16 %v148, %v147
  %v159 = vpack.c.b16 %v150, %v149
  %v160 = vpack.c.b16 %v152, %v151
  %169 = vmatprep.subr.bf16.mxu0 0
  %170 = vmatpush1.bf16.msra.mxu0 %v153
  %171 = vmatprep.subr.bf16.mxu0 0
  %172 = vmatpush1.bf16.msra.mxu0 %v154
  %173 = vmatprep.subr.bf16.mxu0 0
  %174 = vmatpush1.bf16.msra.mxu0 %v155
  %175 = vmatprep.subr.bf16.mxu0 0
  %176 = vmatpush1.bf16.msra.mxu0 %v156
  %177 = vmatprep.subr.bf16.mxu0 0
  %178 = vmatpush1.bf16.msra.mxu0 %v157
  %179 = vmatprep.subr.bf16.mxu0 0
  %180 = vmatpush1.bf16.msra.mxu0 %v158
  %181 = vmatprep.subr.bf16.mxu0 0
  %182 = vmatpush1.bf16.msra.mxu0 %v159
  %183 = vmatprep.subr.bf16.mxu0 0
  %184 = vmatpush1.bf16.msra.mxu0 %v160
  %185 = vmatprep.subr.bf16.mxu0 0
  %186 = vmatpush1.bf16.msra.mxu0 0
  %187 = vmatprep.subr.bf16.mxu0 0
  %188 = vmatpush1.bf16.msra.mxu0 0
  %189 = vmatprep.subr.bf16.mxu0 0
  %190 = vmatpush1.bf16.msra.mxu0 0
  %191 = vmatprep.subr.bf16.mxu0 0
  %192 = vmatpush1.bf16.msra.mxu0 0
  %193 = vmatprep.subr.bf16.mxu0 0
  %194 = vmatpush1.bf16.msra.mxu0 0
  %195 = vmatprep.subr.bf16.mxu0 0
  %196 = vmatpush1.bf16.msra.mxu0 0
  %197 = vmatprep.subr.bf16.mxu0 0
  %198 = vmatpush1.bf16.msra.mxu0 0
  %199 = vmatprep.subr.bf16.mxu0 0
  %200 = vmatpush1.bf16.msra.mxu0 0
  %201 = vmatprep.mubr.bf16.mxu0 0
  %202 = vmatmul.mubr.bf16.gmra.mrb[0].mxu0 %v97
  %v203 = vpop.f32.mrb[0].mxu0
  %v204 = vadd.f32 %v119, %v203
  %v205 = vpop.f32.mrb[0].mxu0
  %v206 = vpop.f32.mrb[0].mxu0
  %v207 = vpop.f32.mrb[0].mxu0
  %208 = vdwg.mxu0
  %v209 = vmax.f32 %v204, 0.0
  %v210 = vpack.c.bf16 %v209, %v209
  %v211 = vld [vmem:[%s5] sm:$0xf]
  %v212 = vld [vmem:[%s5 + $0x4] sm:$0xf]
  %v213 = vld [vmem:[%s5 + $0x8] sm:$0xf]
  %v214 = vld [vmem:[%s5 + $0xc] sm:$0xf]
  %v215 = vld [vmem:[%s5 + $0x10] sm:$0xf]
  %v216 = vld [vmem:[%s5 + $0x14] sm:$0xf]
  %v217 = vld [vmem:[%s5 + $0x18] sm:$0xf]
  %v218 = vld [vmem:[%s5 + $0x1c] sm:$0xf]
  %v219 = vld [vmem:[%s6] sm:$0x1]
  %v221 = vlaneseq
  %v222 = vshrl.u32 %v221, 7
  %v223 = vsub.s32 0, %v222
  %v224 = vrot.slane %v219, %v223
  %v234 = vunpack.c.l.b16 %v211
  %v235 = vunpack.c.l.b16 %v212
  %v236 = vunpack.c.l.b16 %v213
  %v237 = vunpack.c.l.b16 %v214
  %v238 = vunpack.c.l.b16 %v215
  %v239 = vunpack.c.l.b16 %v216
  %v240 = vunpack.c.l.b16 %v217
  %v241 = vunpack.c.l.b16 %v218
  %v242 = vpack.c.b16 %v235, %v234
  %v243 = vpack.c.b16 %v237, %v236
  %v244 = vpack.c.b16 %v239, %v238
  %v245 = vpack.c.b16 %v241, %v240
  %vm250 = vcmask 523264
  %v252 = vsel %vm250, %v210, 0
  %254 = vmatprep.subr.bf16.mxu0 0
  %255 = vmatpush1.bf16.msra.mxu0 %v242
  %256 = vmatprep.subr.bf16.mxu0 0
  %257 = vmatpush1.bf16.msra.mxu0 %v243
  %258 = vmatprep.subr.bf16.mxu0 0
  %259 = vmatpush1.bf16.msra.mxu0 %v244
  %260 = vmatprep.subr.bf16.mxu0 0
  %261 = vmatpush1.bf16.msra.mxu0 %v245
  %262 = vmatprep.subr.bf16.mxu0 0
  %263 = vmatpush1.bf16.msra.mxu0 0
  %264 = vmatprep.subr.bf16.mxu0 0
  %265 = vmatpush1.bf16.msra.mxu0 0
  %266 = vmatprep.subr.bf16.mxu0 0
  %267 = vmatpush1.bf16.msra.mxu0 0
  %268 = vmatprep.subr.bf16.mxu0 0
  %269 = vmatpush1.bf16.msra.mxu0 0
  %270 = vmatprep.subr.bf16.mxu0 0
  %271 = vmatpush1.bf16.msra.mxu0 0
  %272 = vmatprep.subr.bf16.mxu0 0
  %273 = vmatpush1.bf16.msra.mxu0 0
  %274 = vmatprep.subr.bf16.mxu0 0
  %275 = vmatpush1.bf16.msra.mxu0 0
  %276 = vmatprep.subr.bf16.mxu0 0
  %277 = vmatpush1.bf16.msra.mxu0 0
  %278 = vmatprep.subr.bf16.mxu0 0
  %279 = vmatpush1.bf16.msra.mxu0 0
  %280 = vmatprep.subr.bf16.mxu0 0
  %281 = vmatpush1.bf16.msra.mxu0 0
  %282 = vmatprep.subr.bf16.mxu0 0
  %283 = vmatpush1.bf16.msra.mxu0 0
  %284 = vmatprep.subr.bf16.mxu0 0
  %285 = vmatpush1.bf16.msra.mxu0 0
  %286 = vmatprep.mubr.bf16.mxu0 0
  %287 = vmatmul.mubr.bf16.gmra.mrb[0].mxu0 %v252
  %v288 = vpop.f32.mrb[0].mxu0
  %v289 = vadd.f32 %v224, %v288
  %v290 = vpop.f32.mrb[0].mxu0
  %v291 = vpop.f32.mrb[0].mxu0
  %v292 = vpop.f32.mrb[0].mxu0
  %293 = vdwg.mxu0
  %v294 = vmax.f32 %v289, 0.0
  %v295 = vld [vmem:[%s7] sm:$0x1]
  %v297 = vlaneseq
  %v298 = vshrl.u32 %v297, 7
  %v299 = vsub.s32 0, %v298
  %v300 = vrot.slane %v295, %v299
  %v302 = vmul.f32 %v294, %v300
  %vm303 = vcmask 261120
  %v304 = vsel %vm303, %v302, 0.0
  %305 = vadd.xlane.f32.xlu0 %v304
  %v306 = vpop.xlane.xlu0 %305
  %v307 = vld [vmem:[#allocation2] sm:$0x1]
  %v309 = vlaneseq
  %v310 = vshrl.u32 %v309, 7
  %v311 = vsub.s32 0, %v310
  %v312 = vrot.slane %v307, %v311
  %v314 = vadd.f32 %v306, %v312
  %vm315 = vcmask 7168
  %316 = vst.msk [vmem:[%s9] sm:$0xff] %vm315, %v314
  // Predicated region
  $region38: #{tpu_custom_call.1} parent=0 // pred_check
    _
  $region39: #{tpu_custom_call.1} parent=0 // pred_check_branch
    %318 = sbr.rel (0) target = $region41
  $region40: #{tpu_custom_call.1} parent=0 // pred_region
    _
  $region41: #{tpu_custom_call.1} parent=0 // pred_fallthru
    _
  // Predicated region
  $region42: #{tpu_custom_call.1} parent=0 // pred_check
    _
  $region43: #{tpu_custom_call.1} parent=0 // pred_check_branch
    %320 = sbr.rel (0) target = $region45
  $region44: #{tpu_custom_call.1} parent=0 // pred_region
    _
  $region45: #{tpu_custom_call.1} parent=0 // pred_fallthru
    _

</llo_original>
